<compile_context>
chip_gen: v6e
topology: v6e:2x2x1
jax: 0.10.0
libtpu: 0.0.40
codegen_flags: <defaults>
</compile_context>

<pallas_src>
import jax
import jax.numpy as jnp
import numpy as np
from jax.experimental import pallas as pl
from jax.experimental.pallas import tpu as pltpu


# ---------------------------------------------------------------------------
# Pallas kernel
# ---------------------------------------------------------------------------

def _rotary_kernel(x_ref, cos_ref, sin_ref, o_ref):
    # x_ref:   (1, t_tile, H, D)   -- D is the lane dim, H the sublane dim
    # cos_ref: (t_tile, D)         -- full-width [cos, cos]
    # sin_ref: (t_tile, D)         -- full-width signed [sin, -sin]
    d = x_ref.shape[-1]
    x = x_ref[0].astype(jnp.float32)                     # (t_tile, H, D)
    # Circular half-rotation along the lane (D) axis: [x1, x2] -> [x2, x1].
    # jnp.roll with a static shift lowers to two lane slices + a concatenate,
    # which Mosaic supports; cost is hidden under the HBM DMA.
    x_rot = jnp.roll(x, d // 2, axis=x.ndim - 1)
    c = cos_ref[...][:, None, :]                         # broadcast over heads
    s = sin_ref[...][:, None, :]
    o_ref[0] = (x * c + x_rot * s).astype(o_ref.dtype)


# ---------------------------------------------------------------------------
# Wrapper
# ---------------------------------------------------------------------------

def _pick_t_tile(B, T, H, D, itemsize, *,
                 target_block_bytes=4 * 1024 * 1024, min_steps=4):
    """Largest sequence tile (multiple of 8, divisor of T) whose x-block stays
    under ~4 MiB, preferring tiles that still leave >= min_steps grid steps."""
    bytes_per_row = H * D * itemsize
    max_rows = max(8, target_block_bytes // bytes_per_row)
    cands = [t for t in range(8, T + 1, 8) if T % t == 0 and t <= max_rows]
    if not cands:
        return None
    good = [t for t in cands if (T // t) * B >= min_steps]
    return max(good) if good else max(cands)


def rotary_forward(x, cos_packed, sin_packed, *, t_tile=None):
    """Apply Rotary to x of shape (B, T, H, D).

    cos_packed / sin_packed are the one-time packed tables from
    `pack_rotary_tables` with shape (max_seq_len, D): [cos, cos] and
    [sin, -sin].
    """
    B, T, H, D = x.shape
    if D % 2 != 0:
        raise ValueError("head_dim must be even")
    if cos_packed.shape[-1] != D or sin_packed.shape[-1] != D:
        raise ValueError("packed rotary tables must have last dim == head_dim")
    if T > cos_packed.shape[0]:
        raise ValueError("sequence length exceeds precomputed rotary tables")

    if t_tile is None:
        t_tile = _pick_t_tile(B, T, H, D, x.dtype.itemsize)

    if t_tile is None or T % t_tile != 0 or t_tile % 8 != 0:
        # Fallback: one block over the whole sequence; slice the tables so the
        # table block equals its full extent (no (8,128) divisibility needed).
        t_tile = T
        cos_packed = cos_packed[:T]
        sin_packed = sin_packed[:T]

    # B innermost so the table block index (which only depends on t) is
    # constant across consecutive steps -> tables are fetched once per T-tile.
    grid = (T // t_tile, B)

    return pl.pallas_call(
        _rotary_kernel,
        out_shape=jax.ShapeDtypeStruct((B, T, H, D), x.dtype),
        grid=grid,
        in_specs=[
            pl.BlockSpec((1, t_tile, H, D), lambda t, b: (b, t, 0, 0)),   # x
            pl.BlockSpec((t_tile, D), lambda t, b: (t, 0)),               # cos_full
            pl.BlockSpec((t_tile, D), lambda t, b: (t, 0)),               # sin_signed
        ],
        out_specs=pl.BlockSpec((1, t_tile, H, D), lambda t, b: (b, t, 0, 0)),
        compiler_params=pltpu.CompilerParams(
            dimension_semantics=("parallel", "parallel"),
            # ~18 MiB worst case (double-buffered in+out 4 MiB blocks + tables);
            # raise v5e's 16 MiB default scoped-VMEM limit, matches v6e/v7x.
            vmem_limit_bytes=32 * 1024 * 1024,
        ),
    )(x, cos_packed, sin_packed)


# ---------------------------------------------------------------------------
# Table construction (mirrors Rotary.__init__) + one-time packing + reference
# ---------------------------------------------------------------------------

def make_rotary_tables(dim, max_seq_len=65536):
    """cos/sin buffers exactly as in the PyTorch module: (max_seq_len, dim//2)."""
    quarter = dim // 4
    angular_freq = (1.0 / 1024.0) ** jnp.linspace(0.0, 1.0, quarter,
                                                  dtype=jnp.float32)
    angular_freq = jnp.concatenate(
        [angular_freq, jnp.zeros((quarter,), jnp.float32)])
    t = jnp.arange(max_seq_len, dtype=jnp.float32)
    theta = jnp.einsum("i,j->ij", t, angular_freq)
    return jnp.cos(theta), jnp.sin(theta)


def pack_rotary_tables(cos_tab, sin_tab):
    """One-time packing used by the kernel: [cos, cos] and [sin, -sin]."""
    cos_full = jnp.concatenate([cos_tab, cos_tab], axis=-1)       # (L, D)
    sin_signed = jnp.concatenate([sin_tab, -sin_tab], axis=-1)    # (L, D)
    return cos_full, sin_signed


def rotary_ref(x, cos_tab, sin_tab):
    """Pure-JAX mirror of the PyTorch forward."""
    T = x.shape[-3]
    cos = cos_tab[None, :T, None, :]
    sin = sin_tab[None, :T, None, :]
    xf = x.astype(jnp.float32)
    half = x.shape[-1] // 2
    x1, x2 = xf[..., :half], xf[..., half:]
    y = jnp.concatenate([x1 * cos + x2 * sin, -x1 * sin + x2 * cos], axis=-1)
    return y.astype(x.dtype)


# ---------------------------------------------------------------------------
# Demo / correctness check
# ---------------------------------------------------------------------------

if __name__ == "__main__":
    # Small shapes consistent with the module: batch=2, seq=64, heads=8,
    # head_dim=128 (lane-dense minor dim), tables built for max_seq_len=128.
    B, T, H, D = 2, 64, 8, 128
    MAX_SEQ = 128

    key = jax.random.PRNGKey(0)
    x = jax.random.normal(key, (B, T, H, D), jnp.float32)

    cos_tab, sin_tab = make_rotary_tables(D, MAX_SEQ)
    cos_full, sin_signed = pack_rotary_tables(cos_tab, sin_tab)   # hoisted, one-time

    out = jax.block_until_ready(rotary_forward(x, cos_full, sin_signed))
    ref = jax.block_until_ready(rotary_ref(x, cos_tab, sin_tab))

    np.testing.assert_allclose(np.asarray(out), np.asarray(ref),
                               rtol=1e-6, atol=1e-6)
    print("KERNEL_OK")
</pallas_src>

<mosaic_0001>
module attributes {stable_mosaic.version = 11 : i64} {
  func.func @_rotary_kernel(%arg0: i32, %arg1: i32, %arg2: memref<1x32x8x128xf32, #tpu.memory_space<vmem>>, %arg3: memref<32x128xf32, #tpu.memory_space<vmem>>, %arg4: memref<32x128xf32, #tpu.memory_space<vmem>>, %arg5: memref<1x32x8x128xf32, #tpu.memory_space<vmem>>) attributes {dimension_semantics = [#tpu.dimension_semantics<parallel>, #tpu.dimension_semantics<parallel>], iteration_bounds = array<i64: 2, 2>, scalar_prefetch = 0 : i64, scratch_operands = 0 : i64, tpu.core_type = #tpu.core_type<tc>, window_params = [{transform_indices = @transform_0, window_bounds = array<i64: 1, 32, 8, 128>}, {transform_indices = @transform_1, window_bounds = array<i64: 32, 128>}, {transform_indices = @transform_2, window_bounds = array<i64: 32, 128>}, {transform_indices = @transform_3, window_bounds = array<i64: 1, 32, 8, 128>}]} {
    %c0 = arith.constant 0 : index
    %c0_0 = arith.constant 0 : index
    %c0_1 = arith.constant 0 : index
    %c0_2 = arith.constant 0 : index
    %0 = vector.load %arg2[%c0, %c0_0, %c0_1, %c0_2] : memref<1x32x8x128xf32, #tpu.memory_space<vmem>>, vector<1x32x8x128xf32>
    %1 = vector.shape_cast %0 : vector<1x32x8x128xf32> to vector<32x8x128xf32>
    %2 = vector.extract_strided_slice %1 {offsets = [0, 0, 64], sizes = [32, 8, 64], strides = [1, 1, 1]} : vector<32x8x128xf32> to vector<32x8x64xf32>
    %3 = vector.extract_strided_slice %1 {offsets = [0, 0, 0], sizes = [32, 8, 64], strides = [1, 1, 1]} : vector<32x8x128xf32> to vector<32x8x64xf32>
    %4 = tpu.concatenate %2, %3 in 2 : vector<32x8x64xf32>, vector<32x8x64xf32> -> vector<32x8x128xf32>
    %c0_3 = arith.constant 0 : index
    %c0_4 = arith.constant 0 : index
    %5 = vector.load %arg3[%c0_3, %c0_4] : memref<32x128xf32, #tpu.memory_space<vmem>>, vector<32x128xf32>
    %6 = vector.shape_cast %5 : vector<32x128xf32> to vector<32x1x128xf32>
    %c0_5 = arith.constant 0 : index
    %c0_6 = arith.constant 0 : index
    %7 = vector.load %arg4[%c0_5, %c0_6] : memref<32x128xf32, #tpu.memory_space<vmem>>, vector<32x128xf32>
    %8 = vector.shape_cast %7 : vector<32x128xf32> to vector<32x1x128xf32>
    %9 = vector.broadcast %6 : vector<32x1x128xf32> to vector<32x8x128xf32>
    %10 = arith.mulf %1, %9 : vector<32x8x128xf32>
    %11 = vector.broadcast %8 : vector<32x1x128xf32> to vector<32x8x128xf32>
    %12 = arith.mulf %4, %11 : vector<32x8x128xf32>
    %13 = arith.addf %10, %12 : vector<32x8x128xf32>
    %c0_7 = arith.constant 0 : index
    %c0_8 = arith.constant 0 : index
    %c0_9 = arith.constant 0 : index
    %c0_10 = arith.constant 0 : index
    %14 = vector.load %arg5[%c0_7, %c0_8, %c0_9, %c0_10] : memref<1x32x8x128xf32, #tpu.memory_space<vmem>>, vector<1x32x8x128xf32>
    %15 = vector.shape_cast %14 : vector<1x32x8x128xf32> to vector<32x8x128xf32>
    %16 = vector.shape_cast %13 : vector<32x8x128xf32> to vector<1x32x8x128xf32>
    tpu.vector_store %arg5[%c0_7, %c0_8, %c0_9, %c0_10], %16 {strides = array<i32>} : memref<1x32x8x128xf32, #tpu.memory_space<vmem>>, vector<1x32x8x128xf32>,
    return
  }
  func.func @transform_0(%arg0: i32, %arg1: i32) -> (i32, i32, i32, i32) {
    %c0_i32 = arith.constant 0 : i32
    %c0_i32_0 = arith.constant 0 : i32
    %c0_i32_1 = arith.constant 0 : i32
    return %arg1, %arg0, %c0_i32, %c0_i32_0 : i32, i32, i32, i32
  }
  func.func @transform_1(%arg0: i32, %arg1: i32) -> (i32, i32) {
    %c0_i32 = arith.constant 0 : i32
    %c0_i32_0 = arith.constant 0 : i32
    return %arg0, %c0_i32 : i32, i32
  }
  func.func @transform_2(%arg0: i32, %arg1: i32) -> (i32, i32) {
    %c0_i32 = arith.constant 0 : i32
    %c0_i32_0 = arith.constant 0 : i32
    return %arg0, %c0_i32 : i32, i32
  }
  func.func @transform_3(%arg0: i32, %arg1: i32) -> (i32, i32, i32, i32) {
    %c0_i32 = arith.constant 0 : i32
    %c0_i32_0 = arith.constant 0 : i32
    %c0_i32_1 = arith.constant 0 : i32
    return %arg1, %arg0, %c0_i32, %c0_i32_0 : i32, i32, i32, i32
  }
}

</mosaic_0001>

<llo_original>
// kernel: tpu_custom_call.1
$region0: #{tpu_custom_call.1}
  #allocation0 [shape = 'u32[]', space=smem, size = 0x4, offset = 0x4, fixed_abs, tag = 'smem constant byte address 0x4 - core index']
  #allocation1 [shape = 'u32[144,128]{1,0:T(1,128)}', space=vmem, size = 0x12000, scoped, tag = 'internal scratch']
  %s0 = inlined_call_operand.hbm [shape: f32[2,64,8,128], index: 0, kind: input, shape index: {}]
  %s1 = inlined_call_operand.hbm [shape: f32[128,128], index: 1, kind: input, shape index: {}]
  %s2 = inlined_call_operand.hbm [shape: f32[128,128], index: 2, kind: input, shape index: {}]
  %s3 = inlined_call_operand.hbm [shape: f32[2,64,8,128], index: 3, kind: output, shape index: {}]
  %s4 = sld [smem:[#allocation0]]
  $region57: #{tpu_custom_call.1} parent=0
    _
  %s6 = ssub.s32 1, %s4
  %s7 = scalar_select 0, %s6, %s4
  $region1: #{tpu_custom_call.1} parent=0
    #allocation2 [shape = 'u8[262144]{0}', space=vmem, size = 0x40000, scoped, tag = 'input window, operand 0']
    #allocation3 [shape = 's32[2]{0}', space=sflag, size = 0x8, scoped, tag = 'scoped memory for tpu_custom_call.1']
    #allocation4 [shape = 's32[2]{0}', space=sflag, size = 0x8, scoped, tag = 'scoped memory for tpu_custom_call.1']
    #allocation5 [shape = 'u8[32768]{0}', space=vmem, size = 0x8000, scoped, tag = 'input window, operand 1']
    #allocation6 [shape = 's32[2]{0}', space=sflag, size = 0x8, scoped, tag = 'scoped memory for tpu_custom_call.1']
    #allocation7 [shape = 'u8[32768]{0}', space=vmem, size = 0x8000, scoped, tag = 'input window, operand 2']
    #allocation8 [shape = 'u8[262144]{0}', space=vmem, size = 0x40000, scoped, tag = 'output window, operand 0']
    %8 = vsyncpa [#allocation3], 0
    %s9 = scalar_lea.sflag [#allocation3], 1
    %10 = vsyncpa %s9, 0
    %11 = vsyncpa [#allocation6], 0
    %s12 = scalar_lea.sflag [#allocation6], 1
    %13 = vsyncpa %s12, 0
    %14 = vsyncpa [#allocation4], 0
    %s15 = scalar_lea.sflag [#allocation4], 1
    %16 = vsyncpa %s15, 0
    loop: start=0, step=1, limit=6
    $region2: #{tpu_custom_call.1} parent=1 // loop_pre_header
      _
    $region3: #{tpu_custom_call.1} parent=1 // loop_header
      %s18 = sphi 0, %s22
      %p19 = scmp.ge.s32.totalorder %s18, 6
      %s25 = sphi 0, %s37
      %s26 = sphi 0, %s33
      %s27 = sphi 0, %s25
      %s28 = sphi 0, %s26
      %s29 = sphi 0, %s27
      %s30 = sphi 0, %s28
      %s42 = sphi 0, %s44
      %s45 = sphi 0, %s42
      %s46 = sphi 0, %s45
      %s62 = sphi 0, %s46
      %s68 = sphi 0, %s70
      %s71 = sphi 0, %s68
      %s72 = sphi 0, %s71
      %s88 = sphi 0, %s72
      %s94 = sphi 0, %s96
      %s97 = sphi 0, %s94
      %s98 = sphi 0, %s97
      %s114 = sphi 0, %s98
      %s122 = sphi 0, %s124
      %s125 = sphi 0, %s122
      %s126 = sphi 0, %s125
      %s142 = sphi 0, %s126
    $region4: #{tpu_custom_call.1} parent=1 // loop_header_branch
      %21 = sbr.rel (%p19) target = $region8
    $region5: #{tpu_custom_call.1} parent=1 // loop_body
      %s23 = ssub.s32 %s18, 1
      %s24 = ssub.s32 %s18, 2
      %s31 = sadd.s32 1, %s26
      %p32 = scmp.ge.s32.totalorder %s31, 2
      %s33 = scalar_select %p32, 0, %s31
      %s34 = sadd.s32 1, %s25
      %s35 = scalar_select %p32, %s34, %s25
      %p36 = scmp.ge.s32.totalorder %s35, 2
      %s37 = scalar_select %p36, 0, %s35
      %s38 = ssub.s32 %s26, %s33
      %s39 = ssub.s32 %s25, %s37
      %s40 = sor.u32 %s38, %s39
      %p41 = scmp.eq.s32.totalorder %s40, 0
      %s43 = sadd.s32 %s42, 1
      %s44 = scalar_select %p41, %s42, %s43
      %p47 = pneg %p41
      %p48 = scmp.eq.s32.totalorder %s18, 3
      %p49 = por %p47, %p48
      %p50 = scmp.ne.s32.totalorder %s42, %s45
      %p51 = scmp.eq.s32.totalorder %s18, 0
      %p52 = por %p50, %p51
      %p53 = scmp.ne.s32.totalorder %s42, %s45
      %p54 = scmp.eq.s32.totalorder %s23, 3
      %p55 = por %p53, %p54
      %p56 = scmp.ne.s32.totalorder %s45, %s46
      %p57 = scmp.eq.s32.totalorder %s23, 0
      %p58 = por %p56, %p57
      %p59 = scmp.ne.s32.totalorder %s45, %s46
      %p60 = scmp.eq.s32.totalorder %s24, 3
      %p61 = por %p59, %p60
      %p63 = scmp.ne.s32.totalorder %s46, %s62
      %p64 = scmp.eq.s32.totalorder %s24, 0
      %p65 = por %p63, %p64
      %s66 = ssub.s32 %s25, %s37
      %p67 = scmp.eq.s32.totalorder %s66, 0
      %s69 = sadd.s32 %s68, 1
      %s70 = scalar_select %p67, %s68, %s69
      %p73 = pneg %p67
      %p74 = scmp.eq.s32.totalorder %s18, 3
      %p75 = por %p73, %p74
      %p76 = scmp.ne.s32.totalorder %s68, %s71
      %p77 = scmp.eq.s32.totalorder %s18, 0
      %p78 = por %p76, %p77
      %p79 = scmp.ne.s32.totalorder %s68, %s71
      %p80 = scmp.eq.s32.totalorder %s23, 3
      %p81 = por %p79, %p80
      %p82 = scmp.ne.s32.totalorder %s71, %s72
      %p83 = scmp.eq.s32.totalorder %s23, 0
      %p84 = por %p82, %p83
      %p85 = scmp.ne.s32.totalorder %s71, %s72
      %p86 = scmp.eq.s32.totalorder %s24, 3
      %p87 = por %p85, %p86
      %p89 = scmp.ne.s32.totalorder %s72, %s88
      %p90 = scmp.eq.s32.totalorder %s24, 0
      %p91 = por %p89, %p90
      %s92 = ssub.s32 %s25, %s37
      %p93 = scmp.eq.s32.totalorder %s92, 0
      %s95 = sadd.s32 %s94, 1
      %s96 = scalar_select %p93, %s94, %s95
      %p99 = pneg %p93
      %p100 = scmp.eq.s32.totalorder %s18, 3
      %p101 = por %p99, %p100
      %p102 = scmp.ne.s32.totalorder %s94, %s97
      %p103 = scmp.eq.s32.totalorder %s18, 0
      %p104 = por %p102, %p103
      %p105 = scmp.ne.s32.totalorder %s94, %s97
      %p106 = scmp.eq.s32.totalorder %s23, 3
      %p107 = por %p105, %p106
      %p108 = scmp.ne.s32.totalorder %s97, %s98
      %p109 = scmp.eq.s32.totalorder %s23, 0
      %p110 = por %p108, %p109
      %p111 = scmp.ne.s32.totalorder %s97, %s98
      %p112 = scmp.eq.s32.totalorder %s24, 3
      %p113 = por %p111, %p112
      %p115 = scmp.ne.s32.totalorder %s98, %s114
      %p116 = scmp.eq.s32.totalorder %s24, 0
      %p117 = por %p115, %p116
      %s118 = ssub.s32 %s26, %s33
      %s119 = ssub.s32 %s25, %s37
      %s120 = sor.u32 %s118, %s119
      %p121 = scmp.eq.s32.totalorder %s120, 0
      %s123 = sadd.s32 %s122, 1
      %s124 = scalar_select %p121, %s122, %s123
      %p127 = pneg %p121
      %p128 = scmp.eq.s32.totalorder %s18, 3
      %p129 = por %p127, %p128
      %p130 = scmp.ne.s32.totalorder %s122, %s125
      %p131 = scmp.eq.s32.totalorder %s18, 0
      %p132 = por %p130, %p131
      %p133 = scmp.ne.s32.totalorder %s122, %s125
      %p134 = scmp.eq.s32.totalorder %s23, 3
      %p135 = por %p133, %p134
      %p136 = scmp.ne.s32.totalorder %s125, %s126
      %p137 = scmp.eq.s32.totalorder %s23, 0
      %p138 = por %p136, %p137
      %p139 = scmp.ne.s32.totalorder %s125, %s126
      %p140 = scmp.eq.s32.totalorder %s24, 3
      %p141 = por %p139, %p140
      %p143 = scmp.ne.s32.totalorder %s126, %s142
      %p144 = scmp.eq.s32.totalorder %s24, 0
      %p145 = por %p143, %p144
      %p146 = scmp.le.s32.totalorder 1, %s18
      %p147 = scmp.lt.s32.totalorder %s18, 5
      %p148 = pnand %p146, %p147
      %p149 = pneg %p148
      // Predicated region
      $region9: #{tpu_custom_call.1} parent=5 // pred_check
        _
      $region10: #{tpu_custom_call.1} parent=5 // pred_check_branch
        %151 = sbr.rel (%p148) target = $region12
      $region11: #{tpu_custom_call.1} parent=5 // pred_region
        %s152 = ssub.s32 %s18, 1
      $region12: #{tpu_custom_call.1} parent=5 // pred_fallthru
        _
      %p153 = scmp.lt.s32.totalorder %s18, 4
      // Predicated region
      $region13: #{tpu_custom_call.1} parent=5 // pred_check
        %p154 = pneg %p153
      $region14: #{tpu_custom_call.1} parent=5 // pred_check_branch
        %156 = sbr.rel (%p154) target = $region16
      $region15: #{tpu_custom_call.1} parent=5 // pred_region
        // Predicated region
        $region17: #{tpu_custom_call.1} parent=15 // pred_check
          %p157 = pneg %p52
        $region18: #{tpu_custom_call.1} parent=15 // pred_check_branch
          %159 = sbr.rel (%p157) target = $region20
        $region19: #{tpu_custom_call.1} parent=15 // pred_region
          %s160 = sand.u32 %s42, 1
          %s161 = scalar_lea.sflag [#allocation3], %s160
          %s162 = sand.u32 %s42, 1
          %s163 = smul.addr %s162, 256
          %s164 = scalar_lea.vmem [#allocation2], %s163
          %s165 = smul.u32 32, %s25
          %s167 = ssub.s32 4096, 4096
          %168 = vsyncadd %s161, %s167
          %s169 = smul.addr %s26, 64
          %s170 = sadd.s32 %s165, %s169
          %s171 = smul.addr %s170, 128
          %s172 = scalar_lea.hbm %s0, %s171
          %s173 = sshll.u32 %s164, 4
          %s174 = int_to_ptr.vmem [resolvable:$true] %s173
          %179 = dma.hbm_to_vmem [thread:$0]  %s172, 4096, %s174, %s161, 128, 128, 8
        $region20: #{tpu_custom_call.1} parent=15 // pred_fallthru
          _
        // Predicated region
        $region21: #{tpu_custom_call.1} parent=15 // pred_check
          %p180 = pneg %p78
        $region22: #{tpu_custom_call.1} parent=15 // pred_check_branch
          %182 = sbr.rel (%p180) target = $region24
        $region23: #{tpu_custom_call.1} parent=15 // pred_region
          %s183 = sand.u32 %s18, 1
          %s184 = scalar_lea.sflag [#allocation6], %s183
          %s185 = sand.u32 %s68, 1
          %s186 = smul.addr %s185, 32
          %s187 = scalar_lea.vmem [#allocation5], %s186
          %s188 = smul.u32 4, %s25
          %s190 = ssub.s32 512, 512
          %191 = vsyncadd %s184, %s190
          %s192 = smul.addr %s188, 128
          %s193 = scalar_lea.hbm %s1, %s192
          %s194 = sshll.u32 %s187, 4
          %s195 = int_to_ptr.vmem [resolvable:$true] %s194
          %200 = dma.hbm_to_vmem [thread:$0]  %s193, 512, %s195, %s184, 128, 128, 8
        $region24: #{tpu_custom_call.1} parent=15 // pred_fallthru
          _
        // Predicated region
        $region25: #{tpu_custom_call.1} parent=15 // pred_check
          %p201 = pneg %p104
        $region26: #{tpu_custom_call.1} parent=15 // pred_check_branch
          %203 = sbr.rel (%p201) target = $region28
        $region27: #{tpu_custom_call.1} parent=15 // pred_region
          %s204 = sand.u32 %s18, 1
          %s205 = scalar_lea.sflag [#allocation6], %s204
          %s206 = sand.u32 %s94, 1
          %s207 = smul.addr %s206, 32
          %s208 = scalar_lea.vmem [#allocation7], %s207
          %s209 = smul.u32 4, %s25
          %s211 = ssub.s32 512, 512
          %212 = vsyncadd %s205, %s211
          %s213 = smul.addr %s209, 128
          %s214 = scalar_lea.hbm %s2, %s213
          %s215 = sshll.u32 %s208, 4
          %s216 = int_to_ptr.vmem [resolvable:$true] %s215
          %221 = dma.hbm_to_vmem [thread:$0]  %s214, 512, %s216, %s205, 128, 128, 8
        $region28: #{tpu_custom_call.1} parent=15 // pred_fallthru
          _
      $region16: #{tpu_custom_call.1} parent=5 // pred_fallthru
        _
      %p222 = scmp.le.s32.totalorder 1, %s18
      %p223 = scmp.lt.s32.totalorder %s18, 5
      %p224 = pnand %p222, %p223
      %p225 = pneg %p224
      // Predicated region
      $region29: #{tpu_custom_call.1} parent=5 // pred_check
        _
      $region30: #{tpu_custom_call.1} parent=5 // pred_check_branch
        %227 = sbr.rel (%p224) target = $region32
      $region31: #{tpu_custom_call.1} parent=5 // pred_region
        %s228 = ssub.s32 %s18, 1
        %s229 = sand.u32 %s45, 1
        %s230 = scalar_lea.sflag [#allocation3], %s229
        %s231 = sand.u32 %s45, 1
        %s232 = smul.addr %s231, 256
        %s233 = scalar_lea.vmem [#allocation2], %s232
        // Predicated region
        $region33: #{tpu_custom_call.1} parent=31 // pred_check
          %p234 = pneg %p58
        $region34: #{tpu_custom_call.1} parent=31 // pred_check_branch
          %236 = sbr.rel (%p234) target = $region36
        $region35: #{tpu_custom_call.1} parent=31 // pred_region
          %237 = dma.done %s230, 4096
        $region36: #{tpu_custom_call.1} parent=31 // pred_fallthru
          _
        %s238 = sand.u32 %s23, 1
        %s239 = scalar_lea.sflag [#allocation6], %s238
        %s240 = sand.u32 %s71, 1
        %s241 = smul.addr %s240, 32
        %s242 = scalar_lea.vmem [#allocation5], %s241
        // Predicated region
        $region37: #{tpu_custom_call.1} parent=31 // pred_check
          %p243 = pneg %p84
        $region38: #{tpu_custom_call.1} parent=31 // pred_check_branch
          %245 = sbr.rel (%p243) target = $region40
        $region39: #{tpu_custom_call.1} parent=31 // pred_region
          %246 = dma.done %s239, 512
        $region40: #{tpu_custom_call.1} parent=31 // pred_fallthru
          _
        %s247 = sand.u32 %s23, 1
        %s248 = scalar_lea.sflag [#allocation6], %s247
        %s249 = sand.u32 %s97, 1
        %s250 = smul.addr %s249, 32
        %s251 = scalar_lea.vmem [#allocation7], %s250
        // Predicated region
        $region41: #{tpu_custom_call.1} parent=31 // pred_check
          %p252 = pneg %p110
        $region42: #{tpu_custom_call.1} parent=31 // pred_check_branch
          %254 = sbr.rel (%p252) target = $region44
        $region43: #{tpu_custom_call.1} parent=31 // pred_region
          %255 = dma.done %s248, 512
        $region44: #{tpu_custom_call.1} parent=31 // pred_fallthru
          _
        %s256 = sand.u32 %s45, 1
        %s257 = scalar_lea.sflag [#allocation3], %s256
        %s258 = sand.u32 %s45, 1
        %s259 = smul.addr %s258, 256
        %s260 = scalar_lea.vmem [#allocation2], %s259
        %p261 = pneg %p58
        %p262 = pneg %p55
        %s263 = sand.u32 %s23, 1
        %s264 = scalar_lea.sflag [#allocation6], %s263
        %s265 = sand.u32 %s71, 1
        %s266 = smul.addr %s265, 32
        %s267 = scalar_lea.vmem [#allocation5], %s266
        %p268 = pneg %p84
        %p269 = pneg %p81
        %s270 = sand.u32 %s23, 1
        %s271 = scalar_lea.sflag [#allocation6], %s270
        %s272 = sand.u32 %s97, 1
        %s273 = smul.addr %s272, 32
        %s274 = scalar_lea.vmem [#allocation7], %s273
        %p275 = pneg %p110
        %p276 = pneg %p107
        %p277 = pneg %p138
        %p278 = pneg %p135
        %s279 = sand.u32 %s125, 1
        %s280 = scalar_lea.sflag [#allocation4], %s279
        %s281 = sand.u32 %s125, 1
        %s282 = smul.addr %s281, 256
        %s283 = scalar_lea.vmem [#allocation8], %s282
        %s284 = smul.u32 32, %s27
        %s285 = smul.u32 4, %s27
        %s286 = smul.u32 4, %s27
        %s287 = smul.u32 32, %s27
        %v288 = vld [vmem:[%s233] sm:$0xff]
        %v289 = vld [vmem:[%s233 + $0x8] sm:$0xff]
        %v290 = vld [vmem:[%s233 + $0x10] sm:$0xff]
        %v291 = vld [vmem:[%s233 + $0x18] sm:$0xff]
        %v292 = vld [vmem:[%s233 + $0x20] sm:$0xff]
        %v293 = vld [vmem:[%s233 + $0x28] sm:$0xff]
        %v294 = vld [vmem:[%s233 + $0x30] sm:$0xff]
        %v295 = vld [vmem:[%s233 + $0x38] sm:$0xff]
        %v296 = vld [vmem:[%s233 + $0x40] sm:$0xff]
        %v297 = vld [vmem:[%s233 + $0x48] sm:$0xff]
        %v298 = vld [vmem:[%s233 + $0x50] sm:$0xff]
        %v299 = vld [vmem:[%s233 + $0x58] sm:$0xff]
        %v300 = vld [vmem:[%s233 + $0x60] sm:$0xff]
        %v301 = vld [vmem:[%s233 + $0x68] sm:$0xff]
        %v302 = vld [vmem:[%s233 + $0x70] sm:$0xff]
        %v303 = vld [vmem:[%s233 + $0x78] sm:$0xff]
        %v304 = vld [vmem:[%s233 + $0x80] sm:$0xff]
        %v305 = vld [vmem:[%s233 + $0x88] sm:$0xff]
        %v306 = vld [vmem:[%s233 + $0x90] sm:$0xff]
        %v307 = vld [vmem:[%s233 + $0x98] sm:$0xff]
        %v308 = vld [vmem:[%s233 + $0xa0] sm:$0xff]
        %v309 = vld [vmem:[%s233 + $0xa8] sm:$0xff]
        %v310 = vld [vmem:[%s233 + $0xb0] sm:$0xff]
        %v311 = vld [vmem:[%s233 + $0xb8] sm:$0xff]
        %v312 = vld [vmem:[%s233 + $0xc0] sm:$0xff]
        %v313 = vld [vmem:[%s233 + $0xc8] sm:$0xff]
        %v314 = vld [vmem:[%s233 + $0xd0] sm:$0xff]
        %v315 = vld [vmem:[%s233 + $0xd8] sm:$0xff]
        %v316 = vld [vmem:[%s233 + $0xe0] sm:$0xff]
        %v317 = vld [vmem:[%s233 + $0xe8] sm:$0xff]
        %v318 = vld [vmem:[%s233 + $0xf0] sm:$0xff]
        %v319 = vld [vmem:[%s233 + $0xf8] sm:$0xff]
        %352 = vrot.lane.b32.xlu0 %v288, 64
        %v353 = vpop.permute.xlu0 %352
        %354 = vrot.lane.b32.xlu0 %v289, 64
        %v355 = vpop.permute.xlu0 %354
        %356 = vrot.lane.b32.xlu0 %v290, 64
        %v357 = vpop.permute.xlu0 %356
        %358 = vrot.lane.b32.xlu0 %v291, 64
        %v359 = vpop.permute.xlu0 %358
        %360 = vrot.lane.b32.xlu0 %v292, 64
        %v361 = vpop.permute.xlu0 %360
        %362 = vrot.lane.b32.xlu0 %v293, 64
        %v363 = vpop.permute.xlu0 %362
        %364 = vrot.lane.b32.xlu0 %v294, 64
        %v365 = vpop.permute.xlu0 %364
        %366 = vrot.lane.b32.xlu0 %v295, 64
        %v367 = vpop.permute.xlu0 %366
        %368 = vrot.lane.b32.xlu0 %v296, 64
        %v369 = vpop.permute.xlu0 %368
        %370 = vrot.lane.b32.xlu0 %v297, 64
        %v371 = vpop.permute.xlu0 %370
        %372 = vrot.lane.b32.xlu0 %v298, 64
        %v373 = vpop.permute.xlu0 %372
        %374 = vrot.lane.b32.xlu0 %v299, 64
        %v375 = vpop.permute.xlu0 %374
        %376 = vrot.lane.b32.xlu0 %v300, 64
        %v377 = vpop.permute.xlu0 %376
        %378 = vrot.lane.b32.xlu0 %v301, 64
        %v379 = vpop.permute.xlu0 %378
        %380 = vrot.lane.b32.xlu0 %v302, 64
        %v381 = vpop.permute.xlu0 %380
        %382 = vrot.lane.b32.xlu0 %v303, 64
        %v383 = vpop.permute.xlu0 %382
        %384 = vrot.lane.b32.xlu0 %v304, 64
        %v385 = vpop.permute.xlu0 %384
        %386 = vrot.lane.b32.xlu0 %v305, 64
        %v387 = vpop.permute.xlu0 %386
        %388 = vrot.lane.b32.xlu0 %v306, 64
        %v389 = vpop.permute.xlu0 %388
        %390 = vrot.lane.b32.xlu0 %v307, 64
        %v391 = vpop.permute.xlu0 %390
        %392 = vrot.lane.b32.xlu0 %v308, 64
        %v393 = vpop.permute.xlu0 %392
        %394 = vrot.lane.b32.xlu0 %v309, 64
        %v395 = vpop.permute.xlu0 %394
        %396 = vrot.lane.b32.xlu0 %v310, 64
        %v397 = vpop.permute.xlu0 %396
        %398 = vrot.lane.b32.xlu0 %v311, 64
        %v399 = vpop.permute.xlu0 %398
        %400 = vrot.lane.b32.xlu0 %v312, 64
        %v401 = vpop.permute.xlu0 %400
        %402 = vrot.lane.b32.xlu0 %v313, 64
        %v403 = vpop.permute.xlu0 %402
        %404 = vrot.lane.b32.xlu0 %v314, 64
        %v405 = vpop.permute.xlu0 %404
        %406 = vrot.lane.b32.xlu0 %v315, 64
        %v407 = vpop.permute.xlu0 %406
        %408 = vrot.lane.b32.xlu0 %v316, 64
        %v409 = vpop.permute.xlu0 %408
        %410 = vrot.lane.b32.xlu0 %v317, 64
        %v411 = vpop.permute.xlu0 %410
        %412 = vrot.lane.b32.xlu0 %v318, 64
        %v413 = vpop.permute.xlu0 %412
        %414 = vrot.lane.b32.xlu0 %v319, 64
        %v415 = vpop.permute.xlu0 %414
        %v448 = vld [vmem:[%s242] sm:$0xff]
        %v449 = vld [vmem:[%s242 + $0x8] sm:$0xff]
        %v450 = vld [vmem:[%s242 + $0x10] sm:$0xff]
        %v451 = vld [vmem:[%s242 + $0x18] sm:$0xff]
        %v456 = vcombine.high %v448, %v448
        %v458 = vunpack.c.l.s4 1966171168
        %v459 = vunpack.c.0.s8 %v458
        %v460 = vlaneseq
        %v461 = vshrl.u32 %v460, 7
        %v462 = vsub.s32 %v459, %v461
        %v463 = vrot.slane %v448, %v462
        %v465 = vunpack.c.l.s4 1966171168
        %v466 = vunpack.c.0.s8 %v465
        %v467 = vlaneseq
        %v468 = vshrl.u32 %v467, 7
        %v469 = vsub.s32 %v466, %v468
        %v470 = vrot.slane %v456, %v469
        %v471 = vcombine.high %v463, %v463
        %v472 = vcombine.high %v470, %v470
        %v474 = vunpack.c.l.s4 1966171168
        %v475 = vunpack.c.0.s8 %v474
        %v476 = vlaneseq
        %v477 = vshrl.u32 %v476, 7
        %v478 = vsub.s32 %v475, %v477
        %v479 = vrot.slane %v463, %v478
        %v481 = vunpack.c.l.s4 1966171168
        %v482 = vunpack.c.0.s8 %v481
        %v483 = vlaneseq
        %v484 = vshrl.u32 %v483, 7
        %v485 = vsub.s32 %v482, %v484
        %v486 = vrot.slane %v470, %v485
        %v488 = vunpack.c.l.s4 1966171168
        %v489 = vunpack.c.0.s8 %v488
        %v490 = vlaneseq
        %v491 = vshrl.u32 %v490, 7
        %v492 = vsub.s32 %v489, %v491
        %v493 = vrot.slane %v471, %v492
        %v495 = vunpack.c.l.s4 1966171168
        %v496 = vunpack.c.0.s8 %v495
        %v497 = vlaneseq
        %v498 = vshrl.u32 %v497, 7
        %v499 = vsub.s32 %v496, %v498
        %v500 = vrot.slane %v472, %v499
        %v501 = vcombine.high %v479, %v479
        %v502 = vcombine.high %v486, %v486
        %v503 = vcombine.high %v493, %v493
        %v504 = vcombine.high %v500, %v500
        %v505 = vcombine.high %v449, %v449
        %v507 = vunpack.c.l.s4 1966171168
        %v508 = vunpack.c.0.s8 %v507
        %v509 = vlaneseq
        %v510 = vshrl.u32 %v509, 7
        %v511 = vsub.s32 %v508, %v510
        %v512 = vrot.slane %v449, %v511
        %v514 = vunpack.c.l.s4 1966171168
        %v515 = vunpack.c.0.s8 %v514
        %v516 = vlaneseq
        %v517 = vshrl.u32 %v516, 7
        %v518 = vsub.s32 %v515, %v517
        %v519 = vrot.slane %v505, %v518
        %v520 = vcombine.high %v512, %v512
        %v521 = vcombine.high %v519, %v519
        %v523 = vunpack.c.l.s4 1966171168
        %v524 = vunpack.c.0.s8 %v523
        %v525 = vlaneseq
        %v526 = vshrl.u32 %v525, 7
        %v527 = vsub.s32 %v524, %v526
        %v528 = vrot.slane %v512, %v527
        %v530 = vunpack.c.l.s4 1966171168
        %v531 = vunpack.c.0.s8 %v530
        %v532 = vlaneseq
        %v533 = vshrl.u32 %v532, 7
        %v534 = vsub.s32 %v531, %v533
        %v535 = vrot.slane %v519, %v534
        %v537 = vunpack.c.l.s4 1966171168
        %v538 = vunpack.c.0.s8 %v537
        %v539 = vlaneseq
        %v540 = vshrl.u32 %v539, 7
        %v541 = vsub.s32 %v538, %v540
        %v542 = vrot.slane %v520, %v541
        %v544 = vunpack.c.l.s4 1966171168
        %v545 = vunpack.c.0.s8 %v544
        %v546 = vlaneseq
        %v547 = vshrl.u32 %v546, 7
        %v548 = vsub.s32 %v545, %v547
        %v549 = vrot.slane %v521, %v548
        %v550 = vcombine.high %v528, %v528
        %v551 = vcombine.high %v535, %v535
        %v552 = vcombine.high %v542, %v542
        %v553 = vcombine.high %v549, %v549
        %v554 = vcombine.high %v450, %v450
        %v556 = vunpack.c.l.s4 1966171168
        %v557 = vunpack.c.0.s8 %v556
        %v558 = vlaneseq
        %v559 = vshrl.u32 %v558, 7
        %v560 = vsub.s32 %v557, %v559
        %v561 = vrot.slane %v450, %v560
        %v563 = vunpack.c.l.s4 1966171168
        %v564 = vunpack.c.0.s8 %v563
        %v565 = vlaneseq
        %v566 = vshrl.u32 %v565, 7
        %v567 = vsub.s32 %v564, %v566
        %v568 = vrot.slane %v554, %v567
        %v569 = vcombine.high %v561, %v561
        %v570 = vcombine.high %v568, %v568
        %v572 = vunpack.c.l.s4 1966171168
        %v573 = vunpack.c.0.s8 %v572
        %v574 = vlaneseq
        %v575 = vshrl.u32 %v574, 7
        %v576 = vsub.s32 %v573, %v575
        %v577 = vrot.slane %v561, %v576
        %v579 = vunpack.c.l.s4 1966171168
        %v580 = vunpack.c.0.s8 %v579
        %v581 = vlaneseq
        %v582 = vshrl.u32 %v581, 7
        %v583 = vsub.s32 %v580, %v582
        %v584 = vrot.slane %v568, %v583
        %v586 = vunpack.c.l.s4 1966171168
        %v587 = vunpack.c.0.s8 %v586
        %v588 = vlaneseq
        %v589 = vshrl.u32 %v588, 7
        %v590 = vsub.s32 %v587, %v589
        %v591 = vrot.slane %v569, %v590
        %v593 = vunpack.c.l.s4 1966171168
        %v594 = vunpack.c.0.s8 %v593
        %v595 = vlaneseq
        %v596 = vshrl.u32 %v595, 7
        %v597 = vsub.s32 %v594, %v596
        %v598 = vrot.slane %v570, %v597
        %v599 = vcombine.high %v577, %v577
        %v600 = vcombine.high %v584, %v584
        %v601 = vcombine.high %v591, %v591
        %v602 = vcombine.high %v598, %v598
        %v603 = vcombine.high %v451, %v451
        %v605 = vunpack.c.l.s4 1966171168
        %v606 = vunpack.c.0.s8 %v605
        %v607 = vlaneseq
        %v608 = vshrl.u32 %v607, 7
        %v609 = vsub.s32 %v606, %v608
        %v610 = vrot.slane %v451, %v609
        %v612 = vunpack.c.l.s4 1966171168
        %v613 = vunpack.c.0.s8 %v612
        %v614 = vlaneseq
        %v615 = vshrl.u32 %v614, 7
        %v616 = vsub.s32 %v613, %v615
        %v617 = vrot.slane %v603, %v616
        %v618 = vcombine.high %v610, %v610
        %v619 = vcombine.high %v617, %v617
        %v621 = vunpack.c.l.s4 1966171168
        %v622 = vunpack.c.0.s8 %v621
        %v623 = vlaneseq
        %v624 = vshrl.u32 %v623, 7
        %v625 = vsub.s32 %v622, %v624
        %v626 = vrot.slane %v610, %v625
        %v628 = vunpack.c.l.s4 1966171168
        %v629 = vunpack.c.0.s8 %v628
        %v630 = vlaneseq
        %v631 = vshrl.u32 %v630, 7
        %v632 = vsub.s32 %v629, %v631
        %v633 = vrot.slane %v617, %v632
        %v635 = vunpack.c.l.s4 1966171168
        %v636 = vunpack.c.0.s8 %v635
        %v637 = vlaneseq
        %v638 = vshrl.u32 %v637, 7
        %v639 = vsub.s32 %v636, %v638
        %v640 = vrot.slane %v618, %v639
        %v642 = vunpack.c.l.s4 1966171168
        %v643 = vunpack.c.0.s8 %v642
        %v644 = vlaneseq
        %v645 = vshrl.u32 %v644, 7
        %v646 = vsub.s32 %v643, %v645
        %v647 = vrot.slane %v619, %v646
        %v648 = vcombine.high %v626, %v626
        %v649 = vcombine.high %v633, %v633
        %v650 = vcombine.high %v640, %v640
        %v651 = vcombine.high %v647, %v647
        %v652 = vld [vmem:[%s251] sm:$0xff]
        %v653 = vld [vmem:[%s251 + $0x8] sm:$0xff]
        %v654 = vld [vmem:[%s251 + $0x10] sm:$0xff]
        %v655 = vld [vmem:[%s251 + $0x18] sm:$0xff]
        %v660 = vcombine.high %v652, %v652
        %v662 = vunpack.c.l.s4 1966171168
        %v663 = vunpack.c.0.s8 %v662
        %v664 = vlaneseq
        %v665 = vshrl.u32 %v664, 7
        %v666 = vsub.s32 %v663, %v665
        %v667 = vrot.slane %v652, %v666
        %v669 = vunpack.c.l.s4 1966171168
        %v670 = vunpack.c.0.s8 %v669
        %v671 = vlaneseq
        %v672 = vshrl.u32 %v671, 7
        %v673 = vsub.s32 %v670, %v672
        %v674 = vrot.slane %v660, %v673
        %v675 = vcombine.high %v667, %v667
        %v676 = vcombine.high %v674, %v674
        %v678 = vunpack.c.l.s4 1966171168
        %v679 = vunpack.c.0.s8 %v678
        %v680 = vlaneseq
        %v681 = vshrl.u32 %v680, 7
        %v682 = vsub.s32 %v679, %v681
        %v683 = vrot.slane %v667, %v682
        %v685 = vunpack.c.l.s4 1966171168
        %v686 = vunpack.c.0.s8 %v685
        %v687 = vlaneseq
        %v688 = vshrl.u32 %v687, 7
        %v689 = vsub.s32 %v686, %v688
        %v690 = vrot.slane %v674, %v689
        %v692 = vunpack.c.l.s4 1966171168
        %v693 = vunpack.c.0.s8 %v692
        %v694 = vlaneseq
        %v695 = vshrl.u32 %v694, 7
        %v696 = vsub.s32 %v693, %v695
        %v697 = vrot.slane %v675, %v696
        %v699 = vunpack.c.l.s4 1966171168
        %v700 = vunpack.c.0.s8 %v699
        %v701 = vlaneseq
        %v702 = vshrl.u32 %v701, 7
        %v703 = vsub.s32 %v700, %v702
        %v704 = vrot.slane %v676, %v703
        %v705 = vcombine.high %v683, %v683
        %v706 = vcombine.high %v690, %v690
        %v707 = vcombine.high %v697, %v697
        %v708 = vcombine.high %v704, %v704
        %v709 = vcombine.high %v653, %v653
        %v711 = vunpack.c.l.s4 1966171168
        %v712 = vunpack.c.0.s8 %v711
        %v713 = vlaneseq
        %v714 = vshrl.u32 %v713, 7
        %v715 = vsub.s32 %v712, %v714
        %v716 = vrot.slane %v653, %v715
        %v718 = vunpack.c.l.s4 1966171168
        %v719 = vunpack.c.0.s8 %v718
        %v720 = vlaneseq
        %v721 = vshrl.u32 %v720, 7
        %v722 = vsub.s32 %v719, %v721
        %v723 = vrot.slane %v709, %v722
        %v724 = vcombine.high %v716, %v716
        %v725 = vcombine.high %v723, %v723
        %v727 = vunpack.c.l.s4 1966171168
        %v728 = vunpack.c.0.s8 %v727
        %v729 = vlaneseq
        %v730 = vshrl.u32 %v729, 7
        %v731 = vsub.s32 %v728, %v730
        %v732 = vrot.slane %v716, %v731
        %v734 = vunpack.c.l.s4 1966171168
        %v735 = vunpack.c.0.s8 %v734
        %v736 = vlaneseq
        %v737 = vshrl.u32 %v736, 7
        %v738 = vsub.s32 %v735, %v737
        %v739 = vrot.slane %v723, %v738
        %v741 = vunpack.c.l.s4 1966171168
        %v742 = vunpack.c.0.s8 %v741
        %v743 = vlaneseq
        %v744 = vshrl.u32 %v743, 7
        %v745 = vsub.s32 %v742, %v744
        %v746 = vrot.slane %v724, %v745
        %v748 = vunpack.c.l.s4 1966171168
        %v749 = vunpack.c.0.s8 %v748
        %v750 = vlaneseq
        %v751 = vshrl.u32 %v750, 7
        %v752 = vsub.s32 %v749, %v751
        %v753 = vrot.slane %v725, %v752
        %v754 = vcombine.high %v732, %v732
        %v755 = vcombine.high %v739, %v739
        %v756 = vcombine.high %v746, %v746
        %v757 = vcombine.high %v753, %v753
        %v758 = vcombine.high %v654, %v654
        %v760 = vunpack.c.l.s4 1966171168
        %v761 = vunpack.c.0.s8 %v760
        %v762 = vlaneseq
        %v763 = vshrl.u32 %v762, 7
        %v764 = vsub.s32 %v761, %v763
        %v765 = vrot.slane %v654, %v764
        %v767 = vunpack.c.l.s4 1966171168
        %v768 = vunpack.c.0.s8 %v767
        %v769 = vlaneseq
        %v770 = vshrl.u32 %v769, 7
        %v771 = vsub.s32 %v768, %v770
        %v772 = vrot.slane %v758, %v771
        %v773 = vcombine.high %v765, %v765
        %v774 = vcombine.high %v772, %v772
        %v776 = vunpack.c.l.s4 1966171168
        %v777 = vunpack.c.0.s8 %v776
        %v778 = vlaneseq
        %v779 = vshrl.u32 %v778, 7
        %v780 = vsub.s32 %v777, %v779
        %v781 = vrot.slane %v765, %v780
        %v783 = vunpack.c.l.s4 1966171168
        %v784 = vunpack.c.0.s8 %v783
        %v785 = vlaneseq
        %v786 = vshrl.u32 %v785, 7
        %v787 = vsub.s32 %v784, %v786
        %v788 = vrot.slane %v772, %v787
        %v790 = vunpack.c.l.s4 1966171168
        %v791 = vunpack.c.0.s8 %v790
        %v792 = vlaneseq
        %v793 = vshrl.u32 %v792, 7
        %v794 = vsub.s32 %v791, %v793
        %v795 = vrot.slane %v773, %v794
        %v797 = vunpack.c.l.s4 1966171168
        %v798 = vunpack.c.0.s8 %v797
        %v799 = vlaneseq
        %v800 = vshrl.u32 %v799, 7
        %v801 = vsub.s32 %v798, %v800
        %v802 = vrot.slane %v774, %v801
        %v803 = vcombine.high %v781, %v781
        %v804 = vcombine.high %v788, %v788
        %v805 = vcombine.high %v795, %v795
        %v806 = vcombine.high %v802, %v802
        %v807 = vcombine.high %v655, %v655
        %v809 = vunpack.c.l.s4 1966171168
        %v810 = vunpack.c.0.s8 %v809
        %v811 = vlaneseq
        %v812 = vshrl.u32 %v811, 7
        %v813 = vsub.s32 %v810, %v812
        %v814 = vrot.slane %v655, %v813
        %v816 = vunpack.c.l.s4 1966171168
        %v817 = vunpack.c.0.s8 %v816
        %v818 = vlaneseq
        %v819 = vshrl.u32 %v818, 7
        %v820 = vsub.s32 %v817, %v819
        %v821 = vrot.slane %v807, %v820
        %v822 = vcombine.high %v814, %v814
        %v823 = vcombine.high %v821, %v821
        %v825 = vunpack.c.l.s4 1966171168
        %v826 = vunpack.c.0.s8 %v825
        %v827 = vlaneseq
        %v828 = vshrl.u32 %v827, 7
        %v829 = vsub.s32 %v826, %v828
        %v830 = vrot.slane %v814, %v829
        %v832 = vunpack.c.l.s4 1966171168
        %v833 = vunpack.c.0.s8 %v832
        %v834 = vlaneseq
        %v835 = vshrl.u32 %v834, 7
        %v836 = vsub.s32 %v833, %v835
        %v837 = vrot.slane %v821, %v836
        %v839 = vunpack.c.l.s4 1966171168
        %v840 = vunpack.c.0.s8 %v839
        %v841 = vlaneseq
        %v842 = vshrl.u32 %v841, 7
        %v843 = vsub.s32 %v840, %v842
        %v844 = vrot.slane %v822, %v843
        %v846 = vunpack.c.l.s4 1966171168
        %v847 = vunpack.c.0.s8 %v846
        %v848 = vlaneseq
        %v849 = vshrl.u32 %v848, 7
        %v850 = vsub.s32 %v847, %v849
        %v851 = vrot.slane %v823, %v850
        %v852 = vcombine.high %v830, %v830
        %v853 = vcombine.high %v837, %v837
        %v854 = vcombine.high %v844, %v844
        %v855 = vcombine.high %v851, %v851
        %v856 = vlaneseq
        %v857 = vshrl.u32 %v856, 7
        %v858 = vsub.s32 0, %v857
        %v859 = vrot.slane %v479, %v858
        %v860 = vlaneseq
        %v861 = vshrl.u32 %v860, 7
        %v862 = vsub.s32 0, %v861
        %v863 = vrot.slane %v493, %v862
        %v864 = vlaneseq
        %v865 = vshrl.u32 %v864, 7
        %v866 = vsub.s32 0, %v865
        %v867 = vrot.slane %v501, %v866
        %v868 = vlaneseq
        %v869 = vshrl.u32 %v868, 7
        %v870 = vsub.s32 0, %v869
        %v871 = vrot.slane %v503, %v870
        %v872 = vlaneseq
        %v873 = vshrl.u32 %v872, 7
        %v874 = vsub.s32 0, %v873
        %v875 = vrot.slane %v486, %v874
        %v876 = vlaneseq
        %v877 = vshrl.u32 %v876, 7
        %v878 = vsub.s32 0, %v877
        %v879 = vrot.slane %v500, %v878
        %v880 = vlaneseq
        %v881 = vshrl.u32 %v880, 7
        %v882 = vsub.s32 0, %v881
        %v883 = vrot.slane %v502, %v882
        %v884 = vlaneseq
        %v885 = vshrl.u32 %v884, 7
        %v886 = vsub.s32 0, %v885
        %v887 = vrot.slane %v504, %v886
        %v888 = vlaneseq
        %v889 = vshrl.u32 %v888, 7
        %v890 = vsub.s32 0, %v889
        %v891 = vrot.slane %v528, %v890
        %v892 = vlaneseq
        %v893 = vshrl.u32 %v892, 7
        %v894 = vsub.s32 0, %v893
        %v895 = vrot.slane %v542, %v894
        %v896 = vlaneseq
        %v897 = vshrl.u32 %v896, 7
        %v898 = vsub.s32 0, %v897
        %v899 = vrot.slane %v550, %v898
        %v900 = vlaneseq
        %v901 = vshrl.u32 %v900, 7
        %v902 = vsub.s32 0, %v901
        %v903 = vrot.slane %v552, %v902
        %v904 = vlaneseq
        %v905 = vshrl.u32 %v904, 7
        %v906 = vsub.s32 0, %v905
        %v907 = vrot.slane %v535, %v906
        %v908 = vlaneseq
        %v909 = vshrl.u32 %v908, 7
        %v910 = vsub.s32 0, %v909
        %v911 = vrot.slane %v549, %v910
        %v912 = vlaneseq
        %v913 = vshrl.u32 %v912, 7
        %v914 = vsub.s32 0, %v913
        %v915 = vrot.slane %v551, %v914
        %v916 = vlaneseq
        %v917 = vshrl.u32 %v916, 7
        %v918 = vsub.s32 0, %v917
        %v919 = vrot.slane %v553, %v918
        %v920 = vlaneseq
        %v921 = vshrl.u32 %v920, 7
        %v922 = vsub.s32 0, %v921
        %v923 = vrot.slane %v577, %v922
        %v924 = vlaneseq
        %v925 = vshrl.u32 %v924, 7
        %v926 = vsub.s32 0, %v925
        %v927 = vrot.slane %v591, %v926
        %v928 = vlaneseq
        %v929 = vshrl.u32 %v928, 7
        %v930 = vsub.s32 0, %v929
        %v931 = vrot.slane %v599, %v930
        %v932 = vlaneseq
        %v933 = vshrl.u32 %v932, 7
        %v934 = vsub.s32 0, %v933
        %v935 = vrot.slane %v601, %v934
        %v936 = vlaneseq
        %v937 = vshrl.u32 %v936, 7
        %v938 = vsub.s32 0, %v937
        %v939 = vrot.slane %v584, %v938
        %v940 = vlaneseq
        %v941 = vshrl.u32 %v940, 7
        %v942 = vsub.s32 0, %v941
        %v943 = vrot.slane %v598, %v942
        %v944 = vlaneseq
        %v945 = vshrl.u32 %v944, 7
        %v946 = vsub.s32 0, %v945
        %v947 = vrot.slane %v600, %v946
        %v948 = vlaneseq
        %v949 = vshrl.u32 %v948, 7
        %v950 = vsub.s32 0, %v949
        %v951 = vrot.slane %v602, %v950
        %v952 = vlaneseq
        %v953 = vshrl.u32 %v952, 7
        %v954 = vsub.s32 0, %v953
        %v955 = vrot.slane %v626, %v954
        %v956 = vlaneseq
        %v957 = vshrl.u32 %v956, 7
        %v958 = vsub.s32 0, %v957
        %v959 = vrot.slane %v640, %v958
        %v960 = vlaneseq
        %v961 = vshrl.u32 %v960, 7
        %v962 = vsub.s32 0, %v961
        %v963 = vrot.slane %v648, %v962
        %v964 = vlaneseq
        %v965 = vshrl.u32 %v964, 7
        %v966 = vsub.s32 0, %v965
        %v967 = vrot.slane %v650, %v966
        %v968 = vlaneseq
        %v969 = vshrl.u32 %v968, 7
        %v970 = vsub.s32 0, %v969
        %v971 = vrot.slane %v633, %v970
        %v972 = vlaneseq
        %v973 = vshrl.u32 %v972, 7
        %v974 = vsub.s32 0, %v973
        %v975 = vrot.slane %v647, %v974
        %v976 = vlaneseq
        %v977 = vshrl.u32 %v976, 7
        %v978 = vsub.s32 0, %v977
        %v979 = vrot.slane %v649, %v978
        %v980 = vlaneseq
        %v981 = vshrl.u32 %v980, 7
        %v982 = vsub.s32 0, %v981
        %v983 = vrot.slane %v651, %v982
        %v1016 = vmul.f32 %v288, %v859
        %v1017 = vmul.f32 %v289, %v863
        %v1018 = vmul.f32 %v290, %v867
        %v1019 = vmul.f32 %v291, %v871
        %v1020 = vmul.f32 %v292, %v875
        %v1021 = vmul.f32 %v293, %v879
        %v1022 = vmul.f32 %v294, %v883
        %v1023 = vmul.f32 %v295, %v887
        %v1024 = vmul.f32 %v296, %v891
        %v1025 = vmul.f32 %v297, %v895
        %v1026 = vmul.f32 %v298, %v899
        %v1027 = vmul.f32 %v299, %v903
        %v1028 = vmul.f32 %v300, %v907
        %v1029 = vmul.f32 %v301, %v911
        %v1030 = vmul.f32 %v302, %v915
        %v1031 = vmul.f32 %v303, %v919
        %v1032 = vmul.f32 %v304, %v923
        %v1033 = vmul.f32 %v305, %v927
        %v1034 = vmul.f32 %v306, %v931
        %v1035 = vmul.f32 %v307, %v935
        %v1036 = vmul.f32 %v308, %v939
        %v1037 = vmul.f32 %v309, %v943
        %v1038 = vmul.f32 %v310, %v947
        %v1039 = vmul.f32 %v311, %v951
        %v1040 = vmul.f32 %v312, %v955
        %v1041 = vmul.f32 %v313, %v959
        %v1042 = vmul.f32 %v314, %v963
        %v1043 = vmul.f32 %v315, %v967
        %v1044 = vmul.f32 %v316, %v971
        %v1045 = vmul.f32 %v317, %v975
        %v1046 = vmul.f32 %v318, %v979
        %v1047 = vmul.f32 %v319, %v983
        %v1048 = vlaneseq
        %v1049 = vshrl.u32 %v1048, 7
        %v1050 = vsub.s32 0, %v1049
        %v1051 = vrot.slane %v683, %v1050
        %v1052 = vlaneseq
        %v1053 = vshrl.u32 %v1052, 7
        %v1054 = vsub.s32 0, %v1053
        %v1055 = vrot.slane %v697, %v1054
        %v1056 = vlaneseq
        %v1057 = vshrl.u32 %v1056, 7
        %v1058 = vsub.s32 0, %v1057
        %v1059 = vrot.slane %v705, %v1058
        %v1060 = vlaneseq
        %v1061 = vshrl.u32 %v1060, 7
        %v1062 = vsub.s32 0, %v1061
        %v1063 = vrot.slane %v707, %v1062
        %v1064 = vlaneseq
        %v1065 = vshrl.u32 %v1064, 7
        %v1066 = vsub.s32 0, %v1065
        %v1067 = vrot.slane %v690, %v1066
        %v1068 = vlaneseq
        %v1069 = vshrl.u32 %v1068, 7
        %v1070 = vsub.s32 0, %v1069
        %v1071 = vrot.slane %v704, %v1070
        %v1072 = vlaneseq
        %v1073 = vshrl.u32 %v1072, 7
        %v1074 = vsub.s32 0, %v1073
        %v1075 = vrot.slane %v706, %v1074
        %v1076 = vlaneseq
        %v1077 = vshrl.u32 %v1076, 7
        %v1078 = vsub.s32 0, %v1077
        %v1079 = vrot.slane %v708, %v1078
        %v1080 = vlaneseq
        %v1081 = vshrl.u32 %v1080, 7
        %v1082 = vsub.s32 0, %v1081
        %v1083 = vrot.slane %v732, %v1082
        %v1084 = vlaneseq
        %v1085 = vshrl.u32 %v1084, 7
        %v1086 = vsub.s32 0, %v1085
        %v1087 = vrot.slane %v746, %v1086
        %v1088 = vlaneseq
        %v1089 = vshrl.u32 %v1088, 7
        %v1090 = vsub.s32 0, %v1089
        %v1091 = vrot.slane %v754, %v1090
        %v1092 = vlaneseq
        %v1093 = vshrl.u32 %v1092, 7
        %v1094 = vsub.s32 0, %v1093
        %v1095 = vrot.slane %v756, %v1094
        %v1096 = vlaneseq
        %v1097 = vshrl.u32 %v1096, 7
        %v1098 = vsub.s32 0, %v1097
        %v1099 = vrot.slane %v739, %v1098
        %v1100 = vlaneseq
        %v1101 = vshrl.u32 %v1100, 7
        %v1102 = vsub.s32 0, %v1101
        %v1103 = vrot.slane %v753, %v1102
        %v1104 = vlaneseq
        %v1105 = vshrl.u32 %v1104, 7
        %v1106 = vsub.s32 0, %v1105
        %v1107 = vrot.slane %v755, %v1106
        %v1108 = vlaneseq
        %v1109 = vshrl.u32 %v1108, 7
        %v1110 = vsub.s32 0, %v1109
        %v1111 = vrot.slane %v757, %v1110
        %v1112 = vlaneseq
        %v1113 = vshrl.u32 %v1112, 7
        %v1114 = vsub.s32 0, %v1113
        %v1115 = vrot.slane %v781, %v1114
        %v1116 = vlaneseq
        %v1117 = vshrl.u32 %v1116, 7
        %v1118 = vsub.s32 0, %v1117
        %v1119 = vrot.slane %v795, %v1118
        %v1120 = vlaneseq
        %v1121 = vshrl.u32 %v1120, 7
        %v1122 = vsub.s32 0, %v1121
        %v1123 = vrot.slane %v803, %v1122
        %v1124 = vlaneseq
        %v1125 = vshrl.u32 %v1124, 7
        %v1126 = vsub.s32 0, %v1125
        %v1127 = vrot.slane %v805, %v1126
        %v1128 = vlaneseq
        %v1129 = vshrl.u32 %v1128, 7
        %v1130 = vsub.s32 0, %v1129
        %v1131 = vrot.slane %v788, %v1130
        %v1132 = vlaneseq
        %v1133 = vshrl.u32 %v1132, 7
        %v1134 = vsub.s32 0, %v1133
        %v1135 = vrot.slane %v802, %v1134
        %v1136 = vlaneseq
        %v1137 = vshrl.u32 %v1136, 7
        %v1138 = vsub.s32 0, %v1137
        %v1139 = vrot.slane %v804, %v1138
        %v1140 = vlaneseq
        %v1141 = vshrl.u32 %v1140, 7
        %v1142 = vsub.s32 0, %v1141
        %v1143 = vrot.slane %v806, %v1142
        %v1144 = vlaneseq
        %v1145 = vshrl.u32 %v1144, 7
        %v1146 = vsub.s32 0, %v1145
        %v1147 = vrot.slane %v830, %v1146
        %v1148 = vlaneseq
        %v1149 = vshrl.u32 %v1148, 7
        %v1150 = vsub.s32 0, %v1149
        %v1151 = vrot.slane %v844, %v1150
        %v1152 = vlaneseq
        %v1153 = vshrl.u32 %v1152, 7
        %v1154 = vsub.s32 0, %v1153
        %v1155 = vrot.slane %v852, %v1154
        %v1156 = vlaneseq
        %v1157 = vshrl.u32 %v1156, 7
        %v1158 = vsub.s32 0, %v1157
        %v1159 = vrot.slane %v854, %v1158
        %v1160 = vlaneseq
        %v1161 = vshrl.u32 %v1160, 7
        %v1162 = vsub.s32 0, %v1161
        %v1163 = vrot.slane %v837, %v1162
        %v1164 = vlaneseq
        %v1165 = vshrl.u32 %v1164, 7
        %v1166 = vsub.s32 0, %v1165
        %v1167 = vrot.slane %v851, %v1166
        %v1168 = vlaneseq
        %v1169 = vshrl.u32 %v1168, 7
        %v1170 = vsub.s32 0, %v1169
        %v1171 = vrot.slane %v853, %v1170
        %v1172 = vlaneseq
        %v1173 = vshrl.u32 %v1172, 7
        %v1174 = vsub.s32 0, %v1173
        %v1175 = vrot.slane %v855, %v1174
        %v1208 = vmul.f32 %v353, %v1051
        %v1209 = vmul.f32 %v355, %v1055
        %v1210 = vmul.f32 %v357, %v1059
        %v1211 = vmul.f32 %v359, %v1063
        %v1212 = vmul.f32 %v361, %v1067
        %v1213 = vmul.f32 %v363, %v1071
        %v1214 = vmul.f32 %v365, %v1075
        %v1215 = vmul.f32 %v367, %v1079
        %v1216 = vmul.f32 %v369, %v1083
        %v1217 = vmul.f32 %v371, %v1087
        %v1218 = vmul.f32 %v373, %v1091
        %v1219 = vmul.f32 %v375, %v1095
        %v1220 = vmul.f32 %v377, %v1099
        %v1221 = vmul.f32 %v379, %v1103
        %v1222 = vmul.f32 %v381, %v1107
        %v1223 = vmul.f32 %v383, %v1111
        %v1224 = vmul.f32 %v385, %v1115
        %v1225 = vmul.f32 %v387, %v1119
        %v1226 = vmul.f32 %v389, %v1123
        %v1227 = vmul.f32 %v391, %v1127
        %v1228 = vmul.f32 %v393, %v1131
        %v1229 = vmul.f32 %v395, %v1135
        %v1230 = vmul.f32 %v397, %v1139
        %v1231 = vmul.f32 %v399, %v1143
        %v1232 = vmul.f32 %v401, %v1147
        %v1233 = vmul.f32 %v403, %v1151
        %v1234 = vmul.f32 %v405, %v1155
        %v1235 = vmul.f32 %v407, %v1159
        %v1236 = vmul.f32 %v409, %v1163
        %v1237 = vmul.f32 %v411, %v1167
        %v1238 = vmul.f32 %v413, %v1171
        %v1239 = vmul.f32 %v415, %v1175
        %v1240 = vadd.f32 %v1016, %v1208
        %v1241 = vadd.f32 %v1017, %v1209
        %v1242 = vadd.f32 %v1018, %v1210
        %v1243 = vadd.f32 %v1019, %v1211
        %v1244 = vadd.f32 %v1020, %v1212
        %v1245 = vadd.f32 %v1021, %v1213
        %v1246 = vadd.f32 %v1022, %v1214
        %v1247 = vadd.f32 %v1023, %v1215
        %v1248 = vadd.f32 %v1024, %v1216
        %v1249 = vadd.f32 %v1025, %v1217
        %v1250 = vadd.f32 %v1026, %v1218
        %v1251 = vadd.f32 %v1027, %v1219
        %v1252 = vadd.f32 %v1028, %v1220
        %v1253 = vadd.f32 %v1029, %v1221
        %v1254 = vadd.f32 %v1030, %v1222
        %v1255 = vadd.f32 %v1031, %v1223
        %v1256 = vadd.f32 %v1032, %v1224
        %v1257 = vadd.f32 %v1033, %v1225
        %v1258 = vadd.f32 %v1034, %v1226
        %v1259 = vadd.f32 %v1035, %v1227
        %v1260 = vadd.f32 %v1036, %v1228
        %v1261 = vadd.f32 %v1037, %v1229
        %v1262 = vadd.f32 %v1038, %v1230
        %v1263 = vadd.f32 %v1039, %v1231
        %v1264 = vadd.f32 %v1040, %v1232
        %v1265 = vadd.f32 %v1041, %v1233
        %v1266 = vadd.f32 %v1042, %v1234
        %v1267 = vadd.f32 %v1043, %v1235
        %v1268 = vadd.f32 %v1044, %v1236
        %v1269 = vadd.f32 %v1045, %v1237
        %v1270 = vadd.f32 %v1046, %v1238
        %v1271 = vadd.f32 %v1047, %v1239
        %1272 = vst [vmem:[%s283] sm:$0xff] %v1240
        %1273 = vst [vmem:[%s283 + $0x8] sm:$0xff] %v1241
        %1274 = vst [vmem:[%s283 + $0x10] sm:$0xff] %v1242
        %1275 = vst [vmem:[%s283 + $0x18] sm:$0xff] %v1243
        %1276 = vst [vmem:[%s283 + $0x20] sm:$0xff] %v1244
        %1277 = vst [vmem:[%s283 + $0x28] sm:$0xff] %v1245
        %1278 = vst [vmem:[%s283 + $0x30] sm:$0xff] %v1246
        %1279 = vst [vmem:[%s283 + $0x38] sm:$0xff] %v1247
        %1280 = vst [vmem:[%s283 + $0x40] sm:$0xff] %v1248
        %1281 = vst [vmem:[%s283 + $0x48] sm:$0xff] %v1249
        %1282 = vst [vmem:[%s283 + $0x50] sm:$0xff] %v1250
        %1283 = vst [vmem:[%s283 + $0x58] sm:$0xff] %v1251
        %1284 = vst [vmem:[%s283 + $0x60] sm:$0xff] %v1252
        %1285 = vst [vmem:[%s283 + $0x68] sm:$0xff] %v1253
        %1286 = vst [vmem:[%s283 + $0x70] sm:$0xff] %v1254
        %1287 = vst [vmem:[%s283 + $0x78] sm:$0xff] %v1255
        %1288 = vst [vmem:[%s283 + $0x80] sm:$0xff] %v1256
        %1289 = vst [vmem:[%s283 + $0x88] sm:$0xff] %v1257
        %1290 = vst [vmem:[%s283 + $0x90] sm:$0xff] %v1258
        %1291 = vst [vmem:[%s283 + $0x98] sm:$0xff] %v1259
        %1292 = vst [vmem:[%s283 + $0xa0] sm:$0xff] %v1260
        %1293 = vst [vmem:[%s283 + $0xa8] sm:$0xff] %v1261
        %1294 = vst [vmem:[%s283 + $0xb0] sm:$0xff] %v1262
        %1295 = vst [vmem:[%s283 + $0xb8] sm:$0xff] %v1263
        %1296 = vst [vmem:[%s283 + $0xc0] sm:$0xff] %v1264
        %1297 = vst [vmem:[%s283 + $0xc8] sm:$0xff] %v1265
        %1298 = vst [vmem:[%s283 + $0xd0] sm:$0xff] %v1266
        %1299 = vst [vmem:[%s283 + $0xd8] sm:$0xff] %v1267
        %1300 = vst [vmem:[%s283 + $0xe0] sm:$0xff] %v1268
        %1301 = vst [vmem:[%s283 + $0xe8] sm:$0xff] %v1269
        %1302 = vst [vmem:[%s283 + $0xf0] sm:$0xff] %v1270
        %1303 = vst [vmem:[%s283 + $0xf8] sm:$0xff] %v1271
        %s1304 = sand.u32 %s125, 1
        %s1305 = scalar_lea.sflag [#allocation4], %s1304
        %s1306 = sand.u32 %s125, 1
        %s1307 = smul.addr %s1306, 256
        %s1308 = scalar_lea.vmem [#allocation8], %s1307
        // Predicated region
        $region45: #{tpu_custom_call.1} parent=31 // pred_check
          %p1309 = pneg %p135
        $region46: #{tpu_custom_call.1} parent=31 // pred_check_branch
          %1311 = sbr.rel (%p1309) target = $region48
        $region47: #{tpu_custom_call.1} parent=31 // pred_region
          %s1312 = smul.u32 32, %s27
          %s1314 = ssub.s32 4096, 4096
          %1315 = vsyncadd %s1305, %s1314
          %s1316 = smul.addr %s28, 64
          %s1317 = sadd.s32 %s1312, %s1316
          %s1318 = smul.addr %s1317, 128
          %s1319 = scalar_lea.hbm %s3, %s1318
          %s1320 = sshll.u32 %s1308, 4
          %s1321 = int_to_ptr.vmem [resolvable:$true] %s1320
          %1326 = dma.vmem_to_hbm [thread:$0]  %s1321, 4096, %s1319, %s1305, 128, 128, 8
        $region48: #{tpu_custom_call.1} parent=31 // pred_fallthru
          _
      $region32: #{tpu_custom_call.1} parent=5 // pred_fallthru
        _
      %p1327 = scmp.le.s32.totalorder 2, %s18
      // Predicated region
      $region49: #{tpu_custom_call.1} parent=5 // pred_check
        %p1328 = pneg %p1327
      $region50: #{tpu_custom_call.1} parent=5 // pred_check_branch
        %1330 = sbr.rel (%p1328) target = $region52
      $region51: #{tpu_custom_call.1} parent=5 // pred_region
        %s1331 = ssub.s32 %s18, 2
        // Predicated region
        $region53: #{tpu_custom_call.1} parent=51 // pred_check
          %p1332 = pneg %p141
        $region54: #{tpu_custom_call.1} parent=51 // pred_check_branch
          %1334 = sbr.rel (%p1332) target = $region56
        $region55: #{tpu_custom_call.1} parent=51 // pred_region
          %s1335 = sand.u32 %s126, 1
          %s1336 = scalar_lea.sflag [#allocation4], %s1335
          %s1337 = sand.u32 %s126, 1
          %s1338 = smul.addr %s1337, 256
          %s1339 = scalar_lea.vmem [#allocation8], %s1338
          %1340 = dma.done %s1336, 4096
        $region56: #{tpu_custom_call.1} parent=51 // pred_fallthru
          _
      $region52: #{tpu_custom_call.1} parent=5 // pred_fallthru
        _
    $region6: #{tpu_custom_call.1} parent=1 // loop_footer
      %s22 = sadd.s32 1, %s18
    $region7: #{tpu_custom_call.1} parent=1 // loop_footer_branch
      %17 = sbr.rel target = $region3
    $region8: #{tpu_custom_call.1} parent=1 // loop_exit
      _
    %1341 = vsyncpa [#allocation3], 1
    %s1342 = scalar_lea.sflag [#allocation3], 1
    %1343 = vsyncpa %s1342, 1
    %1344 = vsyncpa [#allocation6], 1
    %s1345 = scalar_lea.sflag [#allocation6], 1
    %1346 = vsyncpa %s1345, 1
    %1347 = vsyncpa [#allocation4], 1
    %s1348 = scalar_lea.sflag [#allocation4], 1
    %1349 = vsyncpa %s1348, 1

</llo_original>
